<compile_context>
chip_gen: v5e
topology: v5e:2x2
jax: 0.10.0
libtpu: 0.0.40
codegen_flags: <defaults>
</compile_context>

<pallas_src>
import functools

import jax
import jax.numpy as jnp
from jax.experimental import pallas as pl
from jax.experimental.pallas import tpu as pltpu


def _round_up(x, m):
    return (x + m - 1) // m * m


def ma2_kernel(targets_ref, anchors_ref, cls_ref, g_ref, acc_ref,
               *, n_rows, tile_n, steps_per_core):
    # targets_ref: (1, TN) int32      anchors_ref: (id_pad, 1) int32
    # cls_ref, g_ref: (TN, D) native feature dtype
    # acc_ref: (id_pad, D) f32 output block, resident across the k axis
    c = pl.program_id(0)          # parallel axis (TensorCore split of N-tiles)
    k = pl.program_id(1)          # streamed reduction over N tiles

    @pl.when(k == 0)
    def _():
        acc_ref[...] = jnp.zeros_like(acc_ref)

    t = c * steps_per_core + k                     # logical tile index
    rows_left = n_rows - t * tile_n                # <= 0 for fully padded tiles
    valid = jax.lax.broadcasted_iota(jnp.int32, (tile_n, 1), 0) < rows_left

    # Zero invalid rows explicitly: 0 * garbage (NaN/Inf in the OOB-padded
    # region) would otherwise poison the accumulator.
    diff = jnp.where(valid, cls_ref[...] - g_ref[...],
                     jnp.zeros((), cls_ref.dtype))                # (TN, D)
    mask = (anchors_ref[...] == targets_ref[...]).astype(diff.dtype)  # (id_pad, TN)

    acc_ref[...] += jnp.dot(mask, diff, preferred_element_type=jnp.float32)


def ma2_forward(cls_feature, g_feature, targets, num_pos, *, tn=1024):
    """Pallas implementation of MA2.forward (feat_norm='no', euclidean)."""
    N, D = cls_feature.shape
    id_num = N // 4 // num_pos
    if id_num <= 0:
        raise ValueError(f"N={N} too small for num_pos={num_pos}: id_num == 0")
    id_pad = _round_up(id_num, 8)
    itemsize = cls_feature.dtype.itemsize

    targets = targets.astype(jnp.int32)
    anchor_vals = targets[jnp.arange(id_num) * num_pos]           # targets[i*num_pos]
    pad_anchor = jnp.full((id_pad - id_num,),
                          jnp.iinfo(jnp.int32).min + 1, dtype=jnp.int32)
    anchors = jnp.concatenate([anchor_vals, pad_anchor]).reshape(id_pad, 1)

    # Group counts depend only on targets: one tiny XLA reduction here keeps
    # the per-tile kernel path to a single compare + matmul.
    counts = jnp.sum((anchor_vals[:, None] == targets[None, :])
                     .astype(jnp.float32), axis=1)
    counts = jnp.maximum(counts, 1.0)

    # --- tiling of the streamed N reduction -------------------------------
    assert tn % 128 == 0, "tn must be a multiple of 128"
    if N <= tn:
        TN = N                       # single block == full extent, no padding
    else:
        TN = tn
        # Keep 2 inputs x 2 buffers of feature tiles <= 32 MiB (v7x-safe).
        while TN > 128 and 2 * 2 * TN * D * itemsize > (32 << 20):
            TN //= 2
    nblocks = pl.cdiv(N, TN)
    NC = 2 if nblocks >= 2 else 1    # 'parallel' axis -> both TCs on v7x
    steps_per_core = pl.cdiv(nblocks, NC)
    total_tiles = NC * steps_per_core

    # Only targets (4 bytes/row) get padded; features are streamed in place.
    pad_t = total_tiles * TN - N
    if pad_t:
        sentinel = jnp.iinfo(jnp.int32).min          # never equals an anchor
        targets_p = jnp.concatenate(
            [targets, jnp.full((pad_t,), sentinel, dtype=jnp.int32)])
    else:
        targets_p = targets
    targets2d = targets_p.reshape(1, total_tiles * TN)

    def feat_map(c, k):
        # Clamp so fully padded trailing tiles re-read an in-bounds block;
        # the kernel's row-validity mask zeroes their contribution.
        return (jnp.minimum(c * steps_per_core + k, nblocks - 1), 0)

    kernel = functools.partial(ma2_kernel, n_rows=N, tile_n=TN,
                               steps_per_core=steps_per_core)

    needed = (2 * 2 * TN * D * itemsize            # cls/g double-buffered
              + 2 * (TN * 4 + id_pad * 4)          # targets + anchors
              + 2 * id_pad * D * 4)                # resident output block
    vmem_limit = min(max(needed + (16 << 20), 32 << 20), 60 << 20)

    cost = pl.CostEstimate(
        flops=2 * total_tiles * TN * id_pad * D,
        transcendentals=0,
        bytes_accessed=(2 * N * D * itemsize + total_tiles * TN * 4
                        + NC * id_pad * D * 4))

    acc = pl.pallas_call(
        kernel,
        out_shape=jax.ShapeDtypeStruct((NC, id_pad, D), jnp.float32),
        grid=(NC, steps_per_core),
        in_specs=[
            pl.BlockSpec((1, TN), lambda c, k: (0, c * steps_per_core + k)),
            pl.BlockSpec((id_pad, 1), lambda c, k: (0, 0)),   # anchors resident
            pl.BlockSpec((TN, D), feat_map),                  # cls tile
            pl.BlockSpec((TN, D), feat_map),                  # g tile
        ],
        out_specs=pl.BlockSpec((None, id_pad, D), lambda c, k: (c, 0, 0)),
        compiler_params=pltpu.CompilerParams(
            dimension_semantics=("parallel", "arbitrary"),
            vmem_limit_bytes=vmem_limit),
        cost_estimate=cost,
    )(targets2d, anchors, cls_feature, g_feature)

    # Tiny (id_num x D) epilogue in plain XLA: combine per-core partials,
    # divide by counts, take diagonal distances and their mean.
    md = jnp.sum(acc, axis=0)[:id_num] / counts[:, None]      # fc - gc
    d = jnp.sqrt(jnp.maximum(jnp.sum(md * md, axis=1), 1e-12))
    return jnp.mean(d)


def ma2_reference(cls_feature, g_feature, targets, num_pos):
    """Pure-JAX reference mirroring the PyTorch forward."""
    N = cls_feature.shape[0]
    id_num = N // 4 // num_pos
    fc, gc = [], []
    for i in range(id_num):
        w = (targets == targets[i * num_pos]).astype(jnp.float32)
        fc.append((w[:, None] * cls_feature).sum(0) / w.sum())
        gc.append((w[:, None] * g_feature).sum(0) / w.sum())
    fc = jnp.stack(fc)
    gc = jnp.stack(gc)
    e1 = jnp.sum(fc ** 2, axis=1, keepdims=True)
    e2 = jnp.sum(gc ** 2, axis=1, keepdims=True).T
    d = jnp.sqrt(jnp.maximum(e1 + e2 - 2.0 * fc @ gc.T, 1e-12))
    return jnp.mean(jnp.diag(d))


if __name__ == "__main__":
    key = jax.random.PRNGKey(0)
    k1, k2, k3, k4, k5, k6, k7, k8 = jax.random.split(key, 8)

    # --- test 1: tiny shapes, single grid step, single core --------------
    num_pos = 2
    N, D = 16, 32                 # id_num = N // 4 // num_pos = 2
    cls_feature = jax.random.normal(k1, (N, D), dtype=jnp.float32)
    g_feature = jax.random.normal(k2, (N, D), dtype=jnp.float32)
    targets = jnp.array([0, 0, 1, 1, 0, 0, 1, 1, 2, 2, 3, 3, 2, 2, 3, 3],
                        dtype=jnp.int32)

    out = ma2_forward(cls_feature, g_feature, targets, num_pos)
    jax.block_until_ready(out)
    ref = ma2_reference(cls_feature, g_feature, targets, num_pos)
    assert jnp.allclose(out, ref, rtol=1e-4, atol=1e-5), (out, ref)

    # --- test 2: multi-tile grid, ragged tail tile, 2-way core split -----
    num_pos2, id_num2, D2 = 4, 10, 128
    N2 = 4 * num_pos2 * id_num2   # 160 -> tiles of 128, last tile ragged
    cls2 = jax.random.normal(k3, (N2, D2), dtype=jnp.float32)
    g2 = jax.random.normal(k4, (N2, D2), dtype=jnp.float32)
    t_head = jnp.repeat(jnp.arange(id_num2, dtype=jnp.int32), num_pos2)
    t_rest = jax.random.randint(k5, (N2 - t_head.shape[0],), 0, id_num2,
                                dtype=jnp.int32)
    targets2 = jnp.concatenate([t_head, t_rest])

    out2 = ma2_forward(cls2, g2, targets2, num_pos2, tn=128)
    jax.block_until_ready(out2)
    ref2 = ma2_reference(cls2, g2, targets2, num_pos2)
    assert jnp.allclose(out2, ref2, rtol=1e-4, atol=1e-5), (out2, ref2)

    # --- test 3: odd number of tiles -> one fully padded tile on core 1 --
    num_pos3, D3 = 4, 64
    N3 = 5 * 128                  # 5 tiles of 128 -> cores get 3 + (2 real, 1 pad)
    id_num3 = N3 // 4 // num_pos3  # 40
    cls3 = jax.random.normal(k6, (N3, D3), dtype=jnp.float32)
    g3 = jax.random.normal(k7, (N3, D3), dtype=jnp.float32)
    t_head3 = jnp.repeat(jnp.arange(id_num3, dtype=jnp.int32), num_pos3)
    t_rest3 = jax.random.randint(k8, (N3 - t_head3.shape[0],), 0, id_num3,
                                 dtype=jnp.int32)
    targets3 = jnp.concatenate([t_head3, t_rest3])

    out3 = ma2_forward(cls3, g3, targets3, num_pos3, tn=128)
    jax.block_until_ready(out3)
    ref3 = ma2_reference(cls3, g3, targets3, num_pos3)
    assert jnp.allclose(out3, ref3, rtol=1e-3, atol=1e-5), (out3, ref3)

    print("KERNEL_OK")
</pallas_src>

<mosaic_0001>
module attributes {stable_mosaic.version = 11 : i64} {
  func.func @ma2_kernel(%arg0: i32, %arg1: i32, %arg2: memref<1x16xi32, #tpu.memory_space<vmem>>, %arg3: memref<8x1xi32, #tpu.memory_space<vmem>>, %arg4: memref<16x32xf32, #tpu.memory_space<vmem>>, %arg5: memref<16x32xf32, #tpu.memory_space<vmem>>, %arg6: memref<1x8x32xf32, #tpu.memory_space<vmem>>) attributes {dimension_semantics = [#tpu.dimension_semantics<parallel>, #tpu.dimension_semantics<arbitrary>], iteration_bounds = array<i64: 1, 1>, scalar_prefetch = 0 : i64, scratch_operands = 0 : i64, tpu.core_type = #tpu.core_type<tc>, window_params = [{transform_indices = @transform_0, window_bounds = array<i64: 1, 16>}, {pipeline_mode = #tpu.pipeline_mode<synchronous>, transform_indices = @transform_1, window_bounds = array<i64: 8, 1>}, {transform_indices = @transform_2, window_bounds = array<i64: 16, 32>}, {transform_indices = @transform_3, window_bounds = array<i64: 16, 32>}, {transform_indices = @transform_4, window_bounds = array<i64: 1, 8, 32>}]} {
    %c0_i32 = arith.constant 0 : i32
    %0 = arith.cmpi eq, %arg1, %c0_i32 : i32
    %1 = arith.extui %0 : i1 to i32
    %c0_i32_0 = arith.constant 0 : i32
    %2 = arith.cmpi ne, %1, %c0_i32_0 : i32
    scf.if %2 {
      %cst_16 = arith.constant 0.000000e+00 : f32
      %31 = vector.broadcast %cst_16 : f32 to vector<8x32xf32>
      %c0_17 = arith.constant 0 : index
      %c0_18 = arith.constant 0 : index
      %c0_19 = arith.constant 0 : index
      %32 = vector.load %arg6[%c0_17, %c0_18, %c0_19] : memref<1x8x32xf32, #tpu.memory_space<vmem>>, vector<1x8x32xf32>
      %33 = vector.shape_cast %32 : vector<1x8x32xf32> to vector<8x32xf32>
      %34 = vector.shape_cast %31 : vector<8x32xf32> to vector<1x8x32xf32>
      tpu.vector_store %arg6[%c0_17, %c0_18, %c0_19], %34 {strides = array<i32>} : memref<1x8x32xf32, #tpu.memory_space<vmem>>, vector<1x8x32xf32>,
    } else {
    }
    %c1_i32 = arith.constant 1 : i32
    %3 = arith.muli %arg0, %c1_i32 : i32
    %4 = arith.addi %3, %arg1 : i32
    %c16_i32 = arith.constant 16 : i32
    %5 = arith.muli %4, %c16_i32 : i32
    %c16_i32_1 = arith.constant 16 : i32
    %6 = arith.subi %c16_i32_1, %5 : i32
    %7 = tpu.iota {dimensions = array<i32: 0>} : vector<16x1xi32>
    %8 = vector.broadcast %6 : i32 to vector<16x1xi32>
    %9 = arith.cmpi slt, %7, %8 : vector<16x1xi32>
    %c0 = arith.constant 0 : index
    %c0_2 = arith.constant 0 : index
    %10 = vector.load %arg4[%c0, %c0_2] : memref<16x32xf32, #tpu.memory_space<vmem>>, vector<16x32xf32>
    %c0_3 = arith.constant 0 : index
    %c0_4 = arith.constant 0 : index
    %11 = vector.load %arg5[%c0_3, %c0_4] : memref<16x32xf32, #tpu.memory_space<vmem>>, vector<16x32xf32>
    %12 = arith.subf %10, %11 : vector<16x32xf32>
    %cst = arith.constant 0.000000e+00 : f32
    %13 = vector.shape_cast %9 : vector<16x1xi1> to vector<16x1xi1>
    %14 = vector.broadcast %13 : vector<16x1xi1> to vector<16x32xi1>
    %15 = vector.broadcast %cst : f32 to vector<16x32xf32>
    %16 = arith.select %14, %12, %15 : vector<16x32xi1>, vector<16x32xf32>
    %c0_5 = arith.constant 0 : index
    %c0_6 = arith.constant 0 : index
    %17 = vector.load %arg3[%c0_5, %c0_6] : memref<8x1xi32, #tpu.memory_space<vmem>>, vector<8x1xi32>
    %c0_7 = arith.constant 0 : index
    %c0_8 = arith.constant 0 : index
    %18 = vector.load %arg2[%c0_7, %c0_8] : memref<1x16xi32, #tpu.memory_space<vmem>>, vector<1x16xi32>
    %19 = vector.broadcast %17 : vector<8x1xi32> to vector<8x16xi32>
    %20 = vector.broadcast %18 : vector<1x16xi32> to vector<8x16xi32>
    %21 = arith.cmpi eq, %19, %20 : vector<8x16xi32>
    %22 = arith.extui %21 : vector<8x16xi1> to vector<8x16xi32>
    %23 = arith.sitofp %22 : vector<8x16xi32> to vector<8x16xf32>
    %c0_9 = arith.constant 0 : index
    %c0_10 = arith.constant 0 : index
    %c0_11 = arith.constant 0 : index
    %24 = vector.load %arg6[%c0_9, %c0_10, %c0_11] : memref<1x8x32xf32, #tpu.memory_space<vmem>>, vector<1x8x32xf32>
    %25 = vector.shape_cast %24 : vector<1x8x32xf32> to vector<8x32xf32>
    %cst_12 = arith.constant dense<0.000000e+00> : vector<8x32xf32>
    %26 = tpu.matmul %23, %16, %cst_12 {dimension_numbers = #tpu.dot_dimension_numbers<[1], [0], [0], [1], [0, 0, 1, 1], [], []>} : vector<8x16xf32>, vector<16x32xf32>, vector<8x32xf32> -> vector<8x32xf32>
    %27 = arith.addf %25, %26 : vector<8x32xf32>
    %c0_13 = arith.constant 0 : index
    %c0_14 = arith.constant 0 : index
    %c0_15 = arith.constant 0 : index
    %28 = vector.load %arg6[%c0_13, %c0_14, %c0_15] : memref<1x8x32xf32, #tpu.memory_space<vmem>>, vector<1x8x32xf32>
    %29 = vector.shape_cast %28 : vector<1x8x32xf32> to vector<8x32xf32>
    %30 = vector.shape_cast %27 : vector<8x32xf32> to vector<1x8x32xf32>
    tpu.vector_store %arg6[%c0_13, %c0_14, %c0_15], %30 {strides = array<i32>} : memref<1x8x32xf32, #tpu.memory_space<vmem>>, vector<1x8x32xf32>,
    return
  }
  func.func @transform_0(%arg0: i32, %arg1: i32) -> (i32, i32) {
    %c1_i32 = arith.constant 1 : i32
    %0 = arith.muli %arg0, %c1_i32 : i32
    %1 = arith.addi %0, %arg1 : i32
    %c0_i32 = arith.constant 0 : i32
    %c0_i32_0 = arith.constant 0 : i32
    return %c0_i32, %1 : i32, i32
  }
  func.func @transform_1(%arg0: i32, %arg1: i32) -> (i32, i32) {
    %c0_i32 = arith.constant 0 : i32
    %c0_i32_0 = arith.constant 0 : i32
    %c0_i32_1 = arith.constant 0 : i32
    return %c0_i32, %c0_i32_0 : i32, i32
  }
  func.func @transform_2(%arg0: i32, %arg1: i32) -> (i32, i32) {
    %c1_i32 = arith.constant 1 : i32
    %0 = arith.muli %arg0, %c1_i32 : i32
    %1 = arith.addi %0, %arg1 : i32
    %c0_i32 = arith.constant 0 : i32
    %2 = arith.minsi %1, %c0_i32 : i32
    %c0_i32_0 = arith.constant 0 : i32
    %c0_i32_1 = arith.constant 0 : i32
    return %2, %c0_i32_0 : i32, i32
  }
  func.func @transform_3(%arg0: i32, %arg1: i32) -> (i32, i32) {
    %c1_i32 = arith.constant 1 : i32
    %0 = arith.muli %arg0, %c1_i32 : i32
    %1 = arith.addi %0, %arg1 : i32
    %c0_i32 = arith.constant 0 : i32
    %2 = arith.minsi %1, %c0_i32 : i32
    %c0_i32_0 = arith.constant 0 : i32
    %c0_i32_1 = arith.constant 0 : i32
    return %2, %c0_i32_0 : i32, i32
  }
  func.func @transform_4(%arg0: i32, %arg1: i32) -> (i32, i32, i32) {
    %c0_i32 = arith.constant 0 : i32
    %c0_i32_0 = arith.constant 0 : i32
    %c0_i32_1 = arith.constant 0 : i32
    return %arg0, %c0_i32, %c0_i32_0 : i32, i32, i32
  }
}

</mosaic_0001>

<llo_original>
// kernel: tpu_custom_call.1
$region0: #{tpu_custom_call.1}
  #allocation0 [shape = 'u32[]', space=smem, size = 0x4, offset = 0x4, fixed_abs, tag = 'smem constant byte address 0x4 - core index']
  #allocation1 [shape = 'u32[72,128]{1,0:T(1,128)}', space=vmem, size = 0x9000, scoped, tag = 'internal scratch']
  %s0 = inlined_call_operand.vmem [shape: s32[1,16], index: 0, kind: input, shape index: {}]
  %s1 = inlined_call_operand.vmem [shape: s32[8,1], index: 1, kind: input, shape index: {}]
  %s2 = inlined_call_operand.hbm [shape: f32[16,32], index: 2, kind: input, shape index: {}]
  %s3 = inlined_call_operand.hbm [shape: f32[16,32], index: 3, kind: input, shape index: {}]
  %s4 = inlined_call_operand.hbm [shape: f32[1,8,32], index: 4, kind: output, shape index: {}]
  %s5 = sld [smem:[#allocation0]]
  $region38: #{tpu_custom_call.1} parent=0
    _
  %s7 = ssub.s32 1, %s5
  %s8 = scalar_select 0, %s7, %s5
  $region1: #{tpu_custom_call.1} parent=0
    #allocation2 [shape = 'u8[8192]{0}', space=vmem, size = 0x2000, scoped, tag = 'input window, operand 2, single buffered']
    #allocation3 [shape = 's32[1]{0}', space=sflag, size = 0x4, scoped, tag = 'scoped memory for tpu_custom_call.1']
    #allocation4 [shape = 's32[1]{0}', space=sflag, size = 0x4, scoped, tag = 'scoped memory for tpu_custom_call.1']
    #allocation5 [shape = 'u8[8192]{0}', space=vmem, size = 0x2000, scoped, tag = 'input window, operand 3, single buffered']
    #allocation6 [shape = 's32[1]{0}', space=sflag, size = 0x4, scoped, tag = 'scoped memory for tpu_custom_call.1']
    #allocation7 [shape = 'u8[4096]{0}', space=vmem, size = 0x1000, scoped, tag = 'output window, operand 0, single buffered']
    %9 = vsyncpa [#allocation3], 0
    %10 = vsyncpa [#allocation6], 0
    %11 = vsyncpa [#allocation4], 0
    // Predicated region
    $region2: #{tpu_custom_call.1} parent=1 // pred_check
      _
    $region3: #{tpu_custom_call.1} parent=1 // pred_check_branch
      %13 = sbr.rel (0) target = $region5
    $region4: #{tpu_custom_call.1} parent=1 // pred_region
      %s14 = sadd.s32 0, 0
      %p15 = scmp.lt.s32.totalorder %s14, 0
      %s16 = scalar_select %p15, %s14, 0
      %s17 = scalar_lea.vmem %s0, %s16
      %s18 = sadd.s32 0, 0
    $region5: #{tpu_custom_call.1} parent=1 // pred_fallthru
      _
    // Predicated region
    $region6: #{tpu_custom_call.1} parent=1 // pred_check
      _
    $region7: #{tpu_custom_call.1} parent=1 // pred_check_branch
      %20 = sbr.rel (0) target = $region9
    $region8: #{tpu_custom_call.1} parent=1 // pred_region
      _
    $region9: #{tpu_custom_call.1} parent=1 // pred_fallthru
      _
    // Predicated region
    $region10: #{tpu_custom_call.1} parent=1 // pred_check
      _
    $region11: #{tpu_custom_call.1} parent=1 // pred_check_branch
      %22 = sbr.rel (0) target = $region13
    $region12: #{tpu_custom_call.1} parent=1 // pred_region
      %s23 = sadd.s32 0, 0
      %p24 = scmp.lt.s32.totalorder %s23, 0
      %s25 = scalar_select %p24, %s23, 0
      %s26 = smul.u32 2, %s25
      %28 = vsyncadd [#allocation3], 0
      %s29 = smul.addr %s26, 8
      %s30 = scalar_lea.hbm %s2, %s29
      %s31 = sshll.u32 %s30, 4
      %s32 = int_to_ptr.hbm [resolvable:$true] %s31
      %s33 = sshll.u32 [#allocation2], 4
      %s34 = int_to_ptr.vmem [resolvable:$true] %s33
      %39 = dma.hbm_to_vmem [thread:$0]  %s32, 256, %s34, [#allocation3], 128, 128, 8
    $region13: #{tpu_custom_call.1} parent=1 // pred_fallthru
      _
    // Predicated region
    $region14: #{tpu_custom_call.1} parent=1 // pred_check
      _
    $region15: #{tpu_custom_call.1} parent=1 // pred_check_branch
      %41 = sbr.rel (0) target = $region17
    $region16: #{tpu_custom_call.1} parent=1 // pred_region
      %s42 = sadd.s32 0, 0
      %p43 = scmp.lt.s32.totalorder %s42, 0
      %s44 = scalar_select %p43, %s42, 0
      %s45 = smul.u32 2, %s44
      %47 = vsyncadd [#allocation6], 0
      %s48 = smul.addr %s45, 8
      %s49 = scalar_lea.hbm %s3, %s48
      %s50 = sshll.u32 %s49, 4
      %s51 = int_to_ptr.hbm [resolvable:$true] %s50
      %s52 = sshll.u32 [#allocation5], 4
      %s53 = int_to_ptr.vmem [resolvable:$true] %s52
      %58 = dma.hbm_to_vmem [thread:$0]  %s51, 256, %s53, [#allocation6], 128, 128, 8
    $region17: #{tpu_custom_call.1} parent=1 // pred_fallthru
      _
    // Predicated region
    $region18: #{tpu_custom_call.1} parent=1 // pred_check
      _
    $region19: #{tpu_custom_call.1} parent=1 // pred_check_branch
      %60 = sbr.rel (0) target = $region21
    $region20: #{tpu_custom_call.1} parent=1 // pred_region
      %62 = dma.done [#allocation3], 256
    $region21: #{tpu_custom_call.1} parent=1 // pred_fallthru
      _
    // Predicated region
    $region22: #{tpu_custom_call.1} parent=1 // pred_check
      _
    $region23: #{tpu_custom_call.1} parent=1 // pred_check_branch
      %64 = sbr.rel (0) target = $region25
    $region24: #{tpu_custom_call.1} parent=1 // pred_region
      %66 = dma.done [#allocation6], 256
    $region25: #{tpu_custom_call.1} parent=1 // pred_fallthru
      _
    %s67 = sadd.s32 0, 0
    %p68 = scmp.lt.s32.totalorder %s67, 0
    %s69 = scalar_select %p68, %s67, 0
    %s70 = scalar_lea.vmem %s0, %s69
    %s71 = sadd.s32 0, 0
    %p72 = scmp.lt.s32.totalorder %s71, 0
    %s73 = scalar_select %p72, %s71, 0
    %s74 = scalar_lea.vmem %s0, %s73
    %s75 = sadd.s32 0, 0
    %s76 = sadd.s32 0, 0
    %p77 = scmp.lt.s32.totalorder %s76, 0
    %s78 = scalar_select %p77, %s76, 0
    %s79 = smul.u32 2, %s78
    %s80 = sadd.s32 0, 0
    %p81 = scmp.lt.s32.totalorder %s80, 0
    %s82 = scalar_select %p81, %s80, 0
    %s83 = smul.u32 2, %s82
    %p84 = scmp.eq.s32.totalorder 0, 0
    // Predicated region
    $region26: #{tpu_custom_call.1} parent=1 // pred_check
      %p85 = pneg %p84
    $region27: #{tpu_custom_call.1} parent=1 // pred_check_branch
      %87 = sbr.rel (%p85) target = $region29
    $region28: #{tpu_custom_call.1} parent=1 // pred_region
      %vm88 = vcmask 261120
      %89 = vst.msk [vmem:[#allocation7] sm:$0xff] %vm88, 0.0
    $region29: #{tpu_custom_call.1} parent=1 // pred_fallthru
      _
    %s90 = sadd.s32 0, 0
    %s91 = smul.u32 %s90, 16
    %s92 = ssub.s32 16, %s91
    %v93 = vlaneseq
    %v94 = vshrl.u32 %v93, 7
    %v95 = vadd.s32 %v94, 8
    %v96 = vstv %s92
    %vm97 = vcmp.lt.s32.totalorder %v94, %v96
    %vm98 = vcmp.lt.s32.totalorder %v95, %v96
    %v99 = vld [vmem:[#allocation2] sm:$0xff]
    %v100 = vld [vmem:[#allocation2 + $0x8] sm:$0xff]
    %v101 = vld [vmem:[#allocation5] sm:$0xff]
    %v102 = vld [vmem:[#allocation5 + $0x8] sm:$0xff]
    %v103 = vsub.f32 %v99, %v101
    %v104 = vsub.f32 %v100, %v102
    %v105 = vsel %vm97, 1, 0
    %v106 = vsel %vm98, 1, 0
    %vm107 = vcmp.eq.s32.totalorder %v105, 1
    %vm108 = vcmp.eq.s32.totalorder %v106, 1
    %v109 = vsel %vm107, %v103, 0.0
    %v110 = vsel %vm108, %v104, 0.0
    %v111 = vld [vmem:[%s1] sm:$0xff]
    %v112 = vld [vmem:[%s74] sm:$0x1]
    %113 = vset.pattern.permute.xlu0 0
    %114 = vperm.xlu0 %113, %v111
    %v115 = vpop.permute.xlu0 %114
    %v116 = vperm.slane %v112, 0
    %vm117 = vcmp.eq.s32.totalorder %v115, %v116
    %v118 = vsel %vm117, 1, 0
    %v119 = vcvt.s32.f32 %v118
    %v120 = vld [vmem:[#allocation7] sm:$0xff]
    %vm121 = vcmask 130048
    %v123 = vsel %vm121, %v119, 0
    %125 = vmatpush.msra.mxu0 0.0
    %126 = vmatpush.msra.mxu0 0.0
    %127 = vmatpush.msra.mxu0 0.0
    %128 = vmatpush.msra.mxu0 0.0
    %129 = vmatpush.msra.mxu0 0.0
    %130 = vmatpush.msra.mxu0 0.0
    %131 = vmatpush.msra.mxu0 0.0
    %132 = vmatpush.msra.mxu0 0.0
    %133 = vmatpush.msra.mxu0 0.0
    %134 = vmatpush.msra.mxu0 0.0
    %135 = vmatpush.msra.mxu0 0.0
    %136 = vmatpush.msra.mxu0 0.0
    %137 = vmatpush.msra.mxu0 0.0
    %138 = vmatpush.msra.mxu0 0.0
    %139 = vmatpush.msra.mxu0 %v110
    %140 = vmatpush.msra.mxu0 %v109
    %141 = vmatmul.f32.gmra.mxu0 %v123
    %v142 = vpop.f32.mrf.mxu0
    %v143 = vadd.f32 0.0, %v142
    %144 = vdwg.mxu0
    %v145 = vadd.f32 %v120, %v143
    %vm146 = vcmask 261120
    %147 = vst.msk [vmem:[#allocation7] sm:$0xff] %vm146, %v145
    // Predicated region
    $region30: #{tpu_custom_call.1} parent=1 // pred_check
      _
    $region31: #{tpu_custom_call.1} parent=1 // pred_check_branch
      %149 = sbr.rel (0) target = $region33
    $region32: #{tpu_custom_call.1} parent=1 // pred_region
      %151 = vsyncadd [#allocation4], 0
      %s153 = sshll.u32 [#allocation7], 4
      %s154 = int_to_ptr.vmem [resolvable:$true] %s153
      %s155 = sshll.u32 %s4, 4
      %s156 = int_to_ptr.hbm [resolvable:$true] %s155
      %158 = dma.vmem_to_hbm [thread:$0]  %s154, 128, %s156, [#allocation4]
    $region33: #{tpu_custom_call.1} parent=1 // pred_fallthru
      _
    // Predicated region
    $region34: #{tpu_custom_call.1} parent=1 // pred_check
      _
    $region35: #{tpu_custom_call.1} parent=1 // pred_check_branch
      %160 = sbr.rel (0) target = $region37
    $region36: #{tpu_custom_call.1} parent=1 // pred_region
      %162 = dma.done [#allocation4], 128
    $region37: #{tpu_custom_call.1} parent=1 // pred_fallthru
      _
    %163 = vsyncpa [#allocation3], 1
    %164 = vsyncpa [#allocation6], 1
    %165 = vsyncpa [#allocation4], 1

</llo_original>
